<compile_context>
chip_gen: v5e
topology: v5e:2x2
jax: 0.10.0
libtpu: 0.0.40
codegen_flags: <defaults>
</compile_context>

<pallas_src>
import functools

import jax
import jax.numpy as jnp
from jax import lax
from jax.experimental import pallas as pl
from jax.experimental.pallas import tpu as pltpu

_MIB = 1024 * 1024
_UNROLL_MAX_COILS = 8  # python-unroll coil loops up to this many coils


# --------------------------------------------------------------------------- #
# Kernel bodies
# --------------------------------------------------------------------------- #
def _coil_loop(n_coils, body, init):
    """Coil loop: unrolled for small C (LLO visibility), fori_loop otherwise
    (bounds the live range for large coil counts)."""
    if n_coils <= _UNROLL_MAX_COILS:
        carry = init
        for c in range(n_coils):
            carry = body(c, carry)
        return carry
    return lax.fori_loop(0, n_coils, body, init)


def _std_core(load_x, load_s, comb_ref, res_ref, n_coils):
    """Shared math core.

    load_x(c) / load_s(c) -> (real, imag) f32 tiles of shape (tile_h, W).
    comb_ref: (2, tile_h, W)     planes = [comb_re, comb_im]
    res_ref : (C, 2, tile_h, W)  planes = [res_re, res_im] per coil
    """
    tile_h, width = comb_ref.shape[-2], comb_ref.shape[-1]

    # Pass 1: coil-summed combined image, accumulated into two (tile_h, W)
    # f32 values only (no (C, tile_h, W) temporaries -> small live set).
    def acc(c, carry):
        cr, ci = carry
        xr, xi = load_x(c)
        sr, si = load_s(c)
        cr = cr + (xr * sr + xi * si)     # Re(x * conj(s))
        ci = ci + (xi * sr - xr * si)     # Im(x * conj(s))
        return cr, ci

    zero = jnp.zeros((tile_h, width), jnp.float32)
    comb_re, comb_im = _coil_loop(n_coils, acc, (zero, zero))

    comb_ref[0] = comb_re.astype(comb_ref.dtype)
    comb_ref[1] = comb_im.astype(comb_ref.dtype)

    # Pass 2: per-coil residual = combined - combined * S_c  (complex multiply).
    def res(c, carry):
        sr, si = load_s(c)
        res_ref[c, 0] = (comb_re - (comb_re * sr - comb_im * si)).astype(res_ref.dtype)
        res_ref[c, 1] = (comb_im - (comb_re * si + comb_im * sr)).astype(res_ref.dtype)
        return carry

    _coil_loop(n_coils, res, 0)


def _std_kernel_fused(x_ref, s_ref, comb_ref, res_ref, *, n_coils, width):
    """Primary kernel: inputs arrive interleaved as (C, tile_h, 2W) with
    [.., 2w] = real and [.., 2w+1] = imag.  Real/imag are de-interleaved with
    lane-strided loads; no wrapper transpose is needed."""
    def load_x(c):
        return (x_ref[c, :, pl.ds(0, width, stride=2)].astype(jnp.float32),
                x_ref[c, :, pl.ds(1, width, stride=2)].astype(jnp.float32))

    def load_s(c):
        return (s_ref[c, :, pl.ds(0, width, stride=2)].astype(jnp.float32),
                s_ref[c, :, pl.ds(1, width, stride=2)].astype(jnp.float32))

    _std_core(load_x, load_s, comb_ref, res_ref, n_coils)


def _std_kernel_planar(x_ref, s_ref, comb_ref, res_ref, *, n_coils):
    """Fallback kernel: inputs pre-separated to planar (2, C, tile_h, W)."""
    def load_x(c):
        return x_ref[0, c].astype(jnp.float32), x_ref[1, c].astype(jnp.float32)

    def load_s(c):
        return s_ref[0, c].astype(jnp.float32), s_ref[1, c].astype(jnp.float32)

    _std_core(load_x, load_s, comb_ref, res_ref, n_coils)


# --------------------------------------------------------------------------- #
# Sizing helpers (generation-aware)
# --------------------------------------------------------------------------- #
def _vmem_budgets():
    """Block budget and scoped-VMEM limit derived from the device's VMEM
    capacity (v5e/v6e: 128 MiB, v7x: 64 MiB).  Conservative 64 MiB assumed if
    the hardware query is unavailable."""
    cap = 64 * _MIB
    try:
        info = pltpu.get_tpu_info()
        cap = int(getattr(info, "vmem_capacity_bytes", cap) or cap)
    except Exception:
        pass
    block_budget = min(64 * _MIB, int(cap * 0.55))
    vmem_limit = min(int(cap * 0.85), cap - 4 * _MIB)
    vmem_limit = max(vmem_limit, block_budget + 8 * _MIB)
    return int(block_budget), int(vmem_limit)


def _choose_tile_h(H, W, C, B, itemsize, block_budget):
    """Largest multiple-of-8 tile of H that divides H, keeps the double-buffered
    block footprint under `block_budget`, and leaves >= ~8 total grid steps so
    both v7x TensorCores get work and the DMA pipeline has depth."""
    if H % 8 != 0:
        # Full-dim block is always legal; pad H upstream for large awkward sizes.
        # TODO(synk): ragged last-block support would lift this restriction.
        return H
    per_row = 2 * (6 * C + 2) * W * itemsize   # double-buffered in+out bytes / H-row
    th = (block_budget // max(per_row, 1)) // 8 * 8
    th = max(8, min(th, H))
    min_steps = -(-8 // max(B, 1))             # ceil(8 / B)
    th_cap = max(8, (H // min_steps) // 8 * 8)
    th = min(th, th_cap)
    while H % th != 0:
        th -= 8
    return max(th, 8)


# --------------------------------------------------------------------------- #
# Wrappers
# --------------------------------------------------------------------------- #
def standardization_layer(coil_images, sensitivity_map, *, tile_h=None,
                          fuse_deinterleave=True):
    """AIRS MultiDomainNet StandardizationLayer.

    coil_images, sensitivity_map: [B, C, H, W, 2]  (last dim = [real, imag]).

    Returns (combined, residual):
      combined: [B, 2, H, W]     planes = [comb_re, comb_im]
      residual: [B, C, 2, H, W]  planes = [res_re,  res_im ] per coil
    i.e. the full information of the PyTorch [B, C, H, W, 4] output without
    duplicating the coil-broadcast combined planes (~25% less write traffic).
    Keep downstream consumers on this planar, channels-first layout; use
    `standardization_layer_torch_layout` (test-only) for the exact torch form.
    """
    B, C, H, W, two = coil_images.shape
    assert two == 2 and sensitivity_map.shape == coil_images.shape
    dtype = coil_images.dtype
    itemsize = jnp.dtype(dtype).itemsize

    block_budget, vmem_limit = _vmem_budgets()
    if tile_h is None:
        tile_h = _choose_tile_h(H, W, C, B, itemsize, block_budget)
    assert H % tile_h == 0 and (tile_h % 8 == 0 or tile_h == H), (H, tile_h)
    n_h = H // tile_h

    if fuse_deinterleave:
        # Free reshape (trailing-dim merge): no HBM pre-pass; de-interleave
        # happens in-register inside the kernel.
        x_in = coil_images.reshape(B, C, H, 2 * W)
        s_in = sensitivity_map.reshape(B, C, H, 2 * W)
        kernel = functools.partial(_std_kernel_fused, n_coils=C, width=W)
        in_spec = pl.BlockSpec((None, C, tile_h, 2 * W), lambda b, h: (b, 0, h, 0))
    else:
        # Fallback: planar pre-pass (one extra HBM read+write of each input).
        x_in = jnp.moveaxis(coil_images, -1, 1)       # [B, 2, C, H, W]
        s_in = jnp.moveaxis(sensitivity_map, -1, 1)   # [B, 2, C, H, W]
        kernel = functools.partial(_std_kernel_planar, n_coils=C)
        in_spec = pl.BlockSpec((None, 2, C, tile_h, W), lambda b, h: (b, 0, 0, h, 0))

    comb_spec = pl.BlockSpec((None, 2, tile_h, W), lambda b, h: (b, 0, h, 0))
    res_spec = pl.BlockSpec((None, C, 2, tile_h, W), lambda b, h: (b, 0, 0, h, 0))

    params_cls = getattr(pltpu, "CompilerParams", None) or getattr(pltpu, "TPUCompilerParams")
    compiler_params = params_cls(
        dimension_semantics=("parallel", "parallel"),
        vmem_limit_bytes=int(vmem_limit),
    )

    combined, residual = pl.pallas_call(
        kernel,
        out_shape=(jax.ShapeDtypeStruct((B, 2, H, W), dtype),
                   jax.ShapeDtypeStruct((B, C, 2, H, W), dtype)),
        grid=(B, n_h),
        in_specs=[in_spec, in_spec],
        out_specs=(comb_spec, res_spec),
        compiler_params=compiler_params,
    )(x_in, s_in)
    return combined, residual


def standardization_layer_torch_layout(coil_images, sensitivity_map, **kwargs):
    """Exact PyTorch output layout [B, C, H, W, 4].  Test / interop only: the
    transposes below re-touch HBM and produce a lane-dim-4 layout; real
    consumers should stay on the planar outputs of `standardization_layer`."""
    combined, residual = standardization_layer(coil_images, sensitivity_map, **kwargs)
    comb_bhwc = jnp.moveaxis(combined, 1, -1)           # [B, H, W, 2]
    res_bchwc = jnp.moveaxis(residual, 2, -1)           # [B, C, H, W, 2]
    comb_b = jnp.broadcast_to(comb_bhwc[:, None], res_bchwc.shape)
    return jnp.concatenate([comb_b, res_bchwc], axis=-1)


def _reference(coil_images, sensitivity_map):
    """Pure-JAX reference mirroring the PyTorch StandardizationLayer exactly."""
    def cmul(a, b):
        re = a[..., 0] * b[..., 0] - a[..., 1] * b[..., 1]
        im = a[..., 0] * b[..., 1] + a[..., 1] * b[..., 0]
        return jnp.stack([re, im], axis=-1)

    def conj(a):
        return jnp.stack([a[..., 0], -a[..., 1]], axis=-1)

    combined = cmul(coil_images, conj(sensitivity_map)).sum(axis=1)      # [B,H,W,2]
    residual = combined[:, None] - cmul(combined[:, None], sensitivity_map)
    outs = [jnp.concatenate([combined, residual[:, c]], axis=-1)[:, None]
            for c in range(coil_images.shape[1])]
    return jnp.concatenate(outs, axis=1)                                 # [B,C,H,W,4]


if __name__ == "__main__":
    key = jax.random.PRNGKey(0)
    k1, k2 = jax.random.split(key)
    B, C, H, W = 2, 4, 16, 16
    coil_images = jax.random.normal(k1, (B, C, H, W, 2), dtype=jnp.float32)
    sensitivity_map = jax.random.normal(k2, (B, C, H, W, 2), dtype=jnp.float32)

    ref = _reference(coil_images, sensitivity_map)                       # [B,C,H,W,4]

    def _run_and_check(fused):
        out = standardization_layer_torch_layout(coil_images, sensitivity_map,
                                                 fuse_deinterleave=fused)
        out = jax.block_until_ready(out)
        assert out.shape == (B, C, H, W, 4), out.shape
        assert jnp.allclose(out, ref, atol=1e-5, rtol=1e-5), "mismatch vs reference"
        return out

    try:
        # Primary path: no wrapper transpose, in-kernel lane-strided de-interleave.
        _run_and_check(fused=True)
    except Exception:
        # Fallback: planar pre-pass variant (same kernel math) if the strided
        # de-interleave lowering is unavailable on this jax/libtpu combination.
        _run_and_check(fused=False)

    print("KERNEL_OK")
</pallas_src>

<mosaic_0001>
module attributes {stable_mosaic.version = 11 : i64} {
  func.func @_std_kernel_fused(%arg0: i32, %arg1: i32, %arg2: memref<1x4x8x32xf32, #tpu.memory_space<vmem>>, %arg3: memref<1x4x8x32xf32, #tpu.memory_space<vmem>>, %arg4: memref<1x2x8x16xf32, #tpu.memory_space<vmem>>, %arg5: memref<1x4x2x8x16xf32, #tpu.memory_space<vmem>>) attributes {dimension_semantics = [#tpu.dimension_semantics<parallel>, #tpu.dimension_semantics<parallel>], iteration_bounds = array<i64: 2, 2>, scalar_prefetch = 0 : i64, scratch_operands = 0 : i64, tpu.core_type = #tpu.core_type<tc>, window_params = [{transform_indices = @transform_0, window_bounds = array<i64: 1, 4, 8, 32>}, {transform_indices = @transform_1, window_bounds = array<i64: 1, 4, 8, 32>}, {transform_indices = @transform_2, window_bounds = array<i64: 1, 2, 8, 16>}, {transform_indices = @transform_3, window_bounds = array<i64: 1, 4, 2, 8, 16>}]} {
    %cst = arith.constant 0.000000e+00 : f32
    %0 = vector.broadcast %cst : f32 to vector<8x16xf32>
    %c0 = arith.constant 0 : index
    %c0_0 = arith.constant 0 : index
    %c0_1 = arith.constant 0 : index
    %c0_2 = arith.constant 0 : index
    %1 = tpu.strided_load %arg2[%c0, %c0_0, %c0_1, %c0_2] {strides = array<i32: 1, 1, 1, 2>} : memref<1x4x8x32xf32, #tpu.memory_space<vmem>>, vector<1x1x8x16xf32>
    %2 = vector.shape_cast %1 : vector<1x1x8x16xf32> to vector<8x16xf32>
    %c0_3 = arith.constant 0 : index
    %c0_4 = arith.constant 0 : index
    %c0_5 = arith.constant 0 : index
    %c1 = arith.constant 1 : index
    %3 = tpu.strided_load %arg2[%c0_3, %c0_4, %c0_5, %c1] {strides = array<i32: 1, 1, 1, 2>} : memref<1x4x8x32xf32, #tpu.memory_space<vmem>>, vector<1x1x8x16xf32>
    %4 = vector.shape_cast %3 : vector<1x1x8x16xf32> to vector<8x16xf32>
    %c0_6 = arith.constant 0 : index
    %c0_7 = arith.constant 0 : index
    %c0_8 = arith.constant 0 : index
    %c0_9 = arith.constant 0 : index
    %5 = tpu.strided_load %arg3[%c0_6, %c0_7, %c0_8, %c0_9] {strides = array<i32: 1, 1, 1, 2>} : memref<1x4x8x32xf32, #tpu.memory_space<vmem>>, vector<1x1x8x16xf32>
    %6 = vector.shape_cast %5 : vector<1x1x8x16xf32> to vector<8x16xf32>
    %c0_10 = arith.constant 0 : index
    %c0_11 = arith.constant 0 : index
    %c0_12 = arith.constant 0 : index
    %c1_13 = arith.constant 1 : index
    %7 = tpu.strided_load %arg3[%c0_10, %c0_11, %c0_12, %c1_13] {strides = array<i32: 1, 1, 1, 2>} : memref<1x4x8x32xf32, #tpu.memory_space<vmem>>, vector<1x1x8x16xf32>
    %8 = vector.shape_cast %7 : vector<1x1x8x16xf32> to vector<8x16xf32>
    %9 = arith.mulf %2, %6 : vector<8x16xf32>
    %10 = arith.mulf %4, %8 : vector<8x16xf32>
    %11 = arith.addf %9, %10 : vector<8x16xf32>
    %12 = arith.addf %0, %11 : vector<8x16xf32>
    %13 = arith.mulf %4, %6 : vector<8x16xf32>
    %14 = arith.mulf %2, %8 : vector<8x16xf32>
    %15 = arith.subf %13, %14 : vector<8x16xf32>
    %16 = arith.addf %0, %15 : vector<8x16xf32>
    %c0_14 = arith.constant 0 : index
    %c1_15 = arith.constant 1 : index
    %c0_16 = arith.constant 0 : index
    %c0_17 = arith.constant 0 : index
    %17 = tpu.strided_load %arg2[%c0_14, %c1_15, %c0_16, %c0_17] {strides = array<i32: 1, 1, 1, 2>} : memref<1x4x8x32xf32, #tpu.memory_space<vmem>>, vector<1x1x8x16xf32>
    %18 = vector.shape_cast %17 : vector<1x1x8x16xf32> to vector<8x16xf32>
    %c0_18 = arith.constant 0 : index
    %c1_19 = arith.constant 1 : index
    %c0_20 = arith.constant 0 : index
    %c1_21 = arith.constant 1 : index
    %19 = tpu.strided_load %arg2[%c0_18, %c1_19, %c0_20, %c1_21] {strides = array<i32: 1, 1, 1, 2>} : memref<1x4x8x32xf32, #tpu.memory_space<vmem>>, vector<1x1x8x16xf32>
    %20 = vector.shape_cast %19 : vector<1x1x8x16xf32> to vector<8x16xf32>
    %c0_22 = arith.constant 0 : index
    %c1_23 = arith.constant 1 : index
    %c0_24 = arith.constant 0 : index
    %c0_25 = arith.constant 0 : index
    %21 = tpu.strided_load %arg3[%c0_22, %c1_23, %c0_24, %c0_25] {strides = array<i32: 1, 1, 1, 2>} : memref<1x4x8x32xf32, #tpu.memory_space<vmem>>, vector<1x1x8x16xf32>
    %22 = vector.shape_cast %21 : vector<1x1x8x16xf32> to vector<8x16xf32>
    %c0_26 = arith.constant 0 : index
    %c1_27 = arith.constant 1 : index
    %c0_28 = arith.constant 0 : index
    %c1_29 = arith.constant 1 : index
    %23 = tpu.strided_load %arg3[%c0_26, %c1_27, %c0_28, %c1_29] {strides = array<i32: 1, 1, 1, 2>} : memref<1x4x8x32xf32, #tpu.memory_space<vmem>>, vector<1x1x8x16xf32>
    %24 = vector.shape_cast %23 : vector<1x1x8x16xf32> to vector<8x16xf32>
    %25 = arith.mulf %18, %22 : vector<8x16xf32>
    %26 = arith.mulf %20, %24 : vector<8x16xf32>
    %27 = arith.addf %25, %26 : vector<8x16xf32>
    %28 = arith.addf %12, %27 : vector<8x16xf32>
    %29 = arith.mulf %20, %22 : vector<8x16xf32>
    %30 = arith.mulf %18, %24 : vector<8x16xf32>
    %31 = arith.subf %29, %30 : vector<8x16xf32>
    %32 = arith.addf %16, %31 : vector<8x16xf32>
    %c0_30 = arith.constant 0 : index
    %c2 = arith.constant 2 : index
    %c0_31 = arith.constant 0 : index
    %c0_32 = arith.constant 0 : index
    %33 = tpu.strided_load %arg2[%c0_30, %c2, %c0_31, %c0_32] {strides = array<i32: 1, 1, 1, 2>} : memref<1x4x8x32xf32, #tpu.memory_space<vmem>>, vector<1x1x8x16xf32>
    %34 = vector.shape_cast %33 : vector<1x1x8x16xf32> to vector<8x16xf32>
    %c0_33 = arith.constant 0 : index
    %c2_34 = arith.constant 2 : index
    %c0_35 = arith.constant 0 : index
    %c1_36 = arith.constant 1 : index
    %35 = tpu.strided_load %arg2[%c0_33, %c2_34, %c0_35, %c1_36] {strides = array<i32: 1, 1, 1, 2>} : memref<1x4x8x32xf32, #tpu.memory_space<vmem>>, vector<1x1x8x16xf32>
    %36 = vector.shape_cast %35 : vector<1x1x8x16xf32> to vector<8x16xf32>
    %c0_37 = arith.constant 0 : index
    %c2_38 = arith.constant 2 : index
    %c0_39 = arith.constant 0 : index
    %c0_40 = arith.constant 0 : index
    %37 = tpu.strided_load %arg3[%c0_37, %c2_38, %c0_39, %c0_40] {strides = array<i32: 1, 1, 1, 2>} : memref<1x4x8x32xf32, #tpu.memory_space<vmem>>, vector<1x1x8x16xf32>
    %38 = vector.shape_cast %37 : vector<1x1x8x16xf32> to vector<8x16xf32>
    %c0_41 = arith.constant 0 : index
    %c2_42 = arith.constant 2 : index
    %c0_43 = arith.constant 0 : index
    %c1_44 = arith.constant 1 : index
    %39 = tpu.strided_load %arg3[%c0_41, %c2_42, %c0_43, %c1_44] {strides = array<i32: 1, 1, 1, 2>} : memref<1x4x8x32xf32, #tpu.memory_space<vmem>>, vector<1x1x8x16xf32>
    %40 = vector.shape_cast %39 : vector<1x1x8x16xf32> to vector<8x16xf32>
    %41 = arith.mulf %34, %38 : vector<8x16xf32>
    %42 = arith.mulf %36, %40 : vector<8x16xf32>
    %43 = arith.addf %41, %42 : vector<8x16xf32>
    %44 = arith.addf %28, %43 : vector<8x16xf32>
    %45 = arith.mulf %36, %38 : vector<8x16xf32>
    %46 = arith.mulf %34, %40 : vector<8x16xf32>
    %47 = arith.subf %45, %46 : vector<8x16xf32>
    %48 = arith.addf %32, %47 : vector<8x16xf32>
    %c0_45 = arith.constant 0 : index
    %c3 = arith.constant 3 : index
    %c0_46 = arith.constant 0 : index
    %c0_47 = arith.constant 0 : index
    %49 = tpu.strided_load %arg2[%c0_45, %c3, %c0_46, %c0_47] {strides = array<i32: 1, 1, 1, 2>} : memref<1x4x8x32xf32, #tpu.memory_space<vmem>>, vector<1x1x8x16xf32>
    %50 = vector.shape_cast %49 : vector<1x1x8x16xf32> to vector<8x16xf32>
    %c0_48 = arith.constant 0 : index
    %c3_49 = arith.constant 3 : index
    %c0_50 = arith.constant 0 : index
    %c1_51 = arith.constant 1 : index
    %51 = tpu.strided_load %arg2[%c0_48, %c3_49, %c0_50, %c1_51] {strides = array<i32: 1, 1, 1, 2>} : memref<1x4x8x32xf32, #tpu.memory_space<vmem>>, vector<1x1x8x16xf32>
    %52 = vector.shape_cast %51 : vector<1x1x8x16xf32> to vector<8x16xf32>
    %c0_52 = arith.constant 0 : index
    %c3_53 = arith.constant 3 : index
    %c0_54 = arith.constant 0 : index
    %c0_55 = arith.constant 0 : index
    %53 = tpu.strided_load %arg3[%c0_52, %c3_53, %c0_54, %c0_55] {strides = array<i32: 1, 1, 1, 2>} : memref<1x4x8x32xf32, #tpu.memory_space<vmem>>, vector<1x1x8x16xf32>
    %54 = vector.shape_cast %53 : vector<1x1x8x16xf32> to vector<8x16xf32>
    %c0_56 = arith.constant 0 : index
    %c3_57 = arith.constant 3 : index
    %c0_58 = arith.constant 0 : index
    %c1_59 = arith.constant 1 : index
    %55 = tpu.strided_load %arg3[%c0_56, %c3_57, %c0_58, %c1_59] {strides = array<i32: 1, 1, 1, 2>} : memref<1x4x8x32xf32, #tpu.memory_space<vmem>>, vector<1x1x8x16xf32>
    %56 = vector.shape_cast %55 : vector<1x1x8x16xf32> to vector<8x16xf32>
    %57 = arith.mulf %50, %54 : vector<8x16xf32>
    %58 = arith.mulf %52, %56 : vector<8x16xf32>
    %59 = arith.addf %57, %58 : vector<8x16xf32>
    %60 = arith.addf %44, %59 : vector<8x16xf32>
    %61 = arith.mulf %52, %54 : vector<8x16xf32>
    %62 = arith.mulf %50, %56 : vector<8x16xf32>
    %63 = arith.subf %61, %62 : vector<8x16xf32>
    %64 = arith.addf %48, %63 : vector<8x16xf32>
    %c0_60 = arith.constant 0 : index
    %c0_61 = arith.constant 0 : index
    %c0_62 = arith.constant 0 : index
    %c0_63 = arith.constant 0 : index
    %65 = vector.load %arg4[%c0_60, %c0_61, %c0_62, %c0_63] : memref<1x2x8x16xf32, #tpu.memory_space<vmem>>, vector<1x1x8x16xf32>
    %66 = vector.shape_cast %65 : vector<1x1x8x16xf32> to vector<8x16xf32>
    %67 = vector.shape_cast %60 : vector<8x16xf32> to vector<1x1x8x16xf32>
    tpu.vector_store %arg4[%c0_60, %c0_61, %c0_62, %c0_63], %67 {strides = array<i32>} : memref<1x2x8x16xf32, #tpu.memory_space<vmem>>, vector<1x1x8x16xf32>,
    %c0_64 = arith.constant 0 : index
    %c1_65 = arith.constant 1 : index
    %c0_66 = arith.constant 0 : index
    %c0_67 = arith.constant 0 : index
    %68 = vector.load %arg4[%c0_64, %c1_65, %c0_66, %c0_67] : memref<1x2x8x16xf32, #tpu.memory_space<vmem>>, vector<1x1x8x16xf32>
    %69 = vector.shape_cast %68 : vector<1x1x8x16xf32> to vector<8x16xf32>
    %70 = vector.shape_cast %64 : vector<8x16xf32> to vector<1x1x8x16xf32>
    tpu.vector_store %arg4[%c0_64, %c1_65, %c0_66, %c0_67], %70 {strides = array<i32>} : memref<1x2x8x16xf32, #tpu.memory_space<vmem>>, vector<1x1x8x16xf32>,
    %c0_68 = arith.constant 0 : index
    %c0_69 = arith.constant 0 : index
    %c0_70 = arith.constant 0 : index
    %c0_71 = arith.constant 0 : index
    %71 = tpu.strided_load %arg3[%c0_68, %c0_69, %c0_70, %c0_71] {strides = array<i32: 1, 1, 1, 2>} : memref<1x4x8x32xf32, #tpu.memory_space<vmem>>, vector<1x1x8x16xf32>
    %72 = vector.shape_cast %71 : vector<1x1x8x16xf32> to vector<8x16xf32>
    %c0_72 = arith.constant 0 : index
    %c0_73 = arith.constant 0 : index
    %c0_74 = arith.constant 0 : index
    %c1_75 = arith.constant 1 : index
    %73 = tpu.strided_load %arg3[%c0_72, %c0_73, %c0_74, %c1_75] {strides = array<i32: 1, 1, 1, 2>} : memref<1x4x8x32xf32, #tpu.memory_space<vmem>>, vector<1x1x8x16xf32>
    %74 = vector.shape_cast %73 : vector<1x1x8x16xf32> to vector<8x16xf32>
    %75 = arith.mulf %60, %72 : vector<8x16xf32>
    %76 = arith.mulf %64, %74 : vector<8x16xf32>
    %77 = arith.subf %75, %76 : vector<8x16xf32>
    %78 = arith.subf %60, %77 : vector<8x16xf32>
    %c0_76 = arith.constant 0 : index
    %c0_77 = arith.constant 0 : index
    %c0_78 = arith.constant 0 : index
    %c0_79 = arith.constant 0 : index
    %c0_80 = arith.constant 0 : index
    %79 = vector.load %arg5[%c0_76, %c0_77, %c0_78, %c0_79, %c0_80] : memref<1x4x2x8x16xf32, #tpu.memory_space<vmem>>, vector<1x1x1x8x16xf32>
    %80 = vector.shape_cast %79 : vector<1x1x1x8x16xf32> to vector<8x16xf32>
    %81 = vector.shape_cast %78 : vector<8x16xf32> to vector<1x1x1x8x16xf32>
    tpu.vector_store %arg5[%c0_76, %c0_77, %c0_78, %c0_79, %c0_80], %81 {strides = array<i32>} : memref<1x4x2x8x16xf32, #tpu.memory_space<vmem>>, vector<1x1x1x8x16xf32>,
    %82 = arith.mulf %60, %74 : vector<8x16xf32>
    %83 = arith.mulf %64, %72 : vector<8x16xf32>
    %84 = arith.addf %82, %83 : vector<8x16xf32>
    %85 = arith.subf %64, %84 : vector<8x16xf32>
    %c0_81 = arith.constant 0 : index
    %c0_82 = arith.constant 0 : index
    %c1_83 = arith.constant 1 : index
    %c0_84 = arith.constant 0 : index
    %c0_85 = arith.constant 0 : index
    %86 = vector.load %arg5[%c0_81, %c0_82, %c1_83, %c0_84, %c0_85] : memref<1x4x2x8x16xf32, #tpu.memory_space<vmem>>, vector<1x1x1x8x16xf32>
    %87 = vector.shape_cast %86 : vector<1x1x1x8x16xf32> to vector<8x16xf32>
    %88 = vector.shape_cast %85 : vector<8x16xf32> to vector<1x1x1x8x16xf32>
    tpu.vector_store %arg5[%c0_81, %c0_82, %c1_83, %c0_84, %c0_85], %88 {strides = array<i32>} : memref<1x4x2x8x16xf32, #tpu.memory_space<vmem>>, vector<1x1x1x8x16xf32>,
    %c0_86 = arith.constant 0 : index
    %c1_87 = arith.constant 1 : index
    %c0_88 = arith.constant 0 : index
    %c0_89 = arith.constant 0 : index
    %89 = tpu.strided_load %arg3[%c0_86, %c1_87, %c0_88, %c0_89] {strides = array<i32: 1, 1, 1, 2>} : memref<1x4x8x32xf32, #tpu.memory_space<vmem>>, vector<1x1x8x16xf32>
    %90 = vector.shape_cast %89 : vector<1x1x8x16xf32> to vector<8x16xf32>
    %c0_90 = arith.constant 0 : index
    %c1_91 = arith.constant 1 : index
    %c0_92 = arith.constant 0 : index
    %c1_93 = arith.constant 1 : index
    %91 = tpu.strided_load %arg3[%c0_90, %c1_91, %c0_92, %c1_93] {strides = array<i32: 1, 1, 1, 2>} : memref<1x4x8x32xf32, #tpu.memory_space<vmem>>, vector<1x1x8x16xf32>
    %92 = vector.shape_cast %91 : vector<1x1x8x16xf32> to vector<8x16xf32>
    %93 = arith.mulf %60, %90 : vector<8x16xf32>
    %94 = arith.mulf %64, %92 : vector<8x16xf32>
    %95 = arith.subf %93, %94 : vector<8x16xf32>
    %96 = arith.subf %60, %95 : vector<8x16xf32>
    %c0_94 = arith.constant 0 : index
    %c1_95 = arith.constant 1 : index
    %c0_96 = arith.constant 0 : index
    %c0_97 = arith.constant 0 : index
    %c0_98 = arith.constant 0 : index
    %97 = vector.load %arg5[%c0_94, %c1_95, %c0_96, %c0_97, %c0_98] : memref<1x4x2x8x16xf32, #tpu.memory_space<vmem>>, vector<1x1x1x8x16xf32>
    %98 = vector.shape_cast %97 : vector<1x1x1x8x16xf32> to vector<8x16xf32>
    %99 = vector.shape_cast %96 : vector<8x16xf32> to vector<1x1x1x8x16xf32>
    tpu.vector_store %arg5[%c0_94, %c1_95, %c0_96, %c0_97, %c0_98], %99 {strides = array<i32>} : memref<1x4x2x8x16xf32, #tpu.memory_space<vmem>>, vector<1x1x1x8x16xf32>,
    %100 = arith.mulf %60, %92 : vector<8x16xf32>
    %101 = arith.mulf %64, %90 : vector<8x16xf32>
    %102 = arith.addf %100, %101 : vector<8x16xf32>
    %103 = arith.subf %64, %102 : vector<8x16xf32>
    %c0_99 = arith.constant 0 : index
    %c1_100 = arith.constant 1 : index
    %c1_101 = arith.constant 1 : index
    %c0_102 = arith.constant 0 : index
    %c0_103 = arith.constant 0 : index
    %104 = vector.load %arg5[%c0_99, %c1_100, %c1_101, %c0_102, %c0_103] : memref<1x4x2x8x16xf32, #tpu.memory_space<vmem>>, vector<1x1x1x8x16xf32>
    %105 = vector.shape_cast %104 : vector<1x1x1x8x16xf32> to vector<8x16xf32>
    %106 = vector.shape_cast %103 : vector<8x16xf32> to vector<1x1x1x8x16xf32>
    tpu.vector_store %arg5[%c0_99, %c1_100, %c1_101, %c0_102, %c0_103], %106 {strides = array<i32>} : memref<1x4x2x8x16xf32, #tpu.memory_space<vmem>>, vector<1x1x1x8x16xf32>,
    %c0_104 = arith.constant 0 : index
    %c2_105 = arith.constant 2 : index
    %c0_106 = arith.constant 0 : index
    %c0_107 = arith.constant 0 : index
    %107 = tpu.strided_load %arg3[%c0_104, %c2_105, %c0_106, %c0_107] {strides = array<i32: 1, 1, 1, 2>} : memref<1x4x8x32xf32, #tpu.memory_space<vmem>>, vector<1x1x8x16xf32>
    %108 = vector.shape_cast %107 : vector<1x1x8x16xf32> to vector<8x16xf32>
    %c0_108 = arith.constant 0 : index
    %c2_109 = arith.constant 2 : index
    %c0_110 = arith.constant 0 : index
    %c1_111 = arith.constant 1 : index
    %109 = tpu.strided_load %arg3[%c0_108, %c2_109, %c0_110, %c1_111] {strides = array<i32: 1, 1, 1, 2>} : memref<1x4x8x32xf32, #tpu.memory_space<vmem>>, vector<1x1x8x16xf32>
    %110 = vector.shape_cast %109 : vector<1x1x8x16xf32> to vector<8x16xf32>
    %111 = arith.mulf %60, %108 : vector<8x16xf32>
    %112 = arith.mulf %64, %110 : vector<8x16xf32>
    %113 = arith.subf %111, %112 : vector<8x16xf32>
    %114 = arith.subf %60, %113 : vector<8x16xf32>
    %c0_112 = arith.constant 0 : index
    %c2_113 = arith.constant 2 : index
    %c0_114 = arith.constant 0 : index
    %c0_115 = arith.constant 0 : index
    %c0_116 = arith.constant 0 : index
    %115 = vector.load %arg5[%c0_112, %c2_113, %c0_114, %c0_115, %c0_116] : memref<1x4x2x8x16xf32, #tpu.memory_space<vmem>>, vector<1x1x1x8x16xf32>
    %116 = vector.shape_cast %115 : vector<1x1x1x8x16xf32> to vector<8x16xf32>
    %117 = vector.shape_cast %114 : vector<8x16xf32> to vector<1x1x1x8x16xf32>
    tpu.vector_store %arg5[%c0_112, %c2_113, %c0_114, %c0_115, %c0_116], %117 {strides = array<i32>} : memref<1x4x2x8x16xf32, #tpu.memory_space<vmem>>, vector<1x1x1x8x16xf32>,
    %118 = arith.mulf %60, %110 : vector<8x16xf32>
    %119 = arith.mulf %64, %108 : vector<8x16xf32>
    %120 = arith.addf %118, %119 : vector<8x16xf32>
    %121 = arith.subf %64, %120 : vector<8x16xf32>
    %c0_117 = arith.constant 0 : index
    %c2_118 = arith.constant 2 : index
    %c1_119 = arith.constant 1 : index
    %c0_120 = arith.constant 0 : index
    %c0_121 = arith.constant 0 : index
    %122 = vector.load %arg5[%c0_117, %c2_118, %c1_119, %c0_120, %c0_121] : memref<1x4x2x8x16xf32, #tpu.memory_space<vmem>>, vector<1x1x1x8x16xf32>
    %123 = vector.shape_cast %122 : vector<1x1x1x8x16xf32> to vector<8x16xf32>
    %124 = vector.shape_cast %121 : vector<8x16xf32> to vector<1x1x1x8x16xf32>
    tpu.vector_store %arg5[%c0_117, %c2_118, %c1_119, %c0_120, %c0_121], %124 {strides = array<i32>} : memref<1x4x2x8x16xf32, #tpu.memory_space<vmem>>, vector<1x1x1x8x16xf32>,
    %c0_122 = arith.constant 0 : index
    %c3_123 = arith.constant 3 : index
    %c0_124 = arith.constant 0 : index
    %c0_125 = arith.constant 0 : index
    %125 = tpu.strided_load %arg3[%c0_122, %c3_123, %c0_124, %c0_125] {strides = array<i32: 1, 1, 1, 2>} : memref<1x4x8x32xf32, #tpu.memory_space<vmem>>, vector<1x1x8x16xf32>
    %126 = vector.shape_cast %125 : vector<1x1x8x16xf32> to vector<8x16xf32>
    %c0_126 = arith.constant 0 : index
    %c3_127 = arith.constant 3 : index
    %c0_128 = arith.constant 0 : index
    %c1_129 = arith.constant 1 : index
    %127 = tpu.strided_load %arg3[%c0_126, %c3_127, %c0_128, %c1_129] {strides = array<i32: 1, 1, 1, 2>} : memref<1x4x8x32xf32, #tpu.memory_space<vmem>>, vector<1x1x8x16xf32>
    %128 = vector.shape_cast %127 : vector<1x1x8x16xf32> to vector<8x16xf32>
    %129 = arith.mulf %60, %126 : vector<8x16xf32>
    %130 = arith.mulf %64, %128 : vector<8x16xf32>
    %131 = arith.subf %129, %130 : vector<8x16xf32>
    %132 = arith.subf %60, %131 : vector<8x16xf32>
    %c0_130 = arith.constant 0 : index
    %c3_131 = arith.constant 3 : index
    %c0_132 = arith.constant 0 : index
    %c0_133 = arith.constant 0 : index
    %c0_134 = arith.constant 0 : index
    %133 = vector.load %arg5[%c0_130, %c3_131, %c0_132, %c0_133, %c0_134] : memref<1x4x2x8x16xf32, #tpu.memory_space<vmem>>, vector<1x1x1x8x16xf32>
    %134 = vector.shape_cast %133 : vector<1x1x1x8x16xf32> to vector<8x16xf32>
    %135 = vector.shape_cast %132 : vector<8x16xf32> to vector<1x1x1x8x16xf32>
    tpu.vector_store %arg5[%c0_130, %c3_131, %c0_132, %c0_133, %c0_134], %135 {strides = array<i32>} : memref<1x4x2x8x16xf32, #tpu.memory_space<vmem>>, vector<1x1x1x8x16xf32>,
    %136 = arith.mulf %60, %128 : vector<8x16xf32>
    %137 = arith.mulf %64, %126 : vector<8x16xf32>
    %138 = arith.addf %136, %137 : vector<8x16xf32>
    %139 = arith.subf %64, %138 : vector<8x16xf32>
    %c0_135 = arith.constant 0 : index
    %c3_136 = arith.constant 3 : index
    %c1_137 = arith.constant 1 : index
    %c0_138 = arith.constant 0 : index
    %c0_139 = arith.constant 0 : index
    %140 = vector.load %arg5[%c0_135, %c3_136, %c1_137, %c0_138, %c0_139] : memref<1x4x2x8x16xf32, #tpu.memory_space<vmem>>, vector<1x1x1x8x16xf32>
    %141 = vector.shape_cast %140 : vector<1x1x1x8x16xf32> to vector<8x16xf32>
    %142 = vector.shape_cast %139 : vector<8x16xf32> to vector<1x1x1x8x16xf32>
    tpu.vector_store %arg5[%c0_135, %c3_136, %c1_137, %c0_138, %c0_139], %142 {strides = array<i32>} : memref<1x4x2x8x16xf32, #tpu.memory_space<vmem>>, vector<1x1x1x8x16xf32>,
    return
  }
  func.func @transform_0(%arg0: i32, %arg1: i32) -> (i32, i32, i32, i32) {
    %c0_i32 = arith.constant 0 : i32
    %c0_i32_0 = arith.constant 0 : i32
    %c0_i32_1 = arith.constant 0 : i32
    return %arg0, %c0_i32, %arg1, %c0_i32_0 : i32, i32, i32, i32
  }
  func.func @transform_1(%arg0: i32, %arg1: i32) -> (i32, i32, i32, i32) {
    %c0_i32 = arith.constant 0 : i32
    %c0_i32_0 = arith.constant 0 : i32
    %c0_i32_1 = arith.constant 0 : i32
    return %arg0, %c0_i32, %arg1, %c0_i32_0 : i32, i32, i32, i32
  }
  func.func @transform_2(%arg0: i32, %arg1: i32) -> (i32, i32, i32, i32) {
    %c0_i32 = arith.constant 0 : i32
    %c0_i32_0 = arith.constant 0 : i32
    %c0_i32_1 = arith.constant 0 : i32
    return %arg0, %c0_i32, %arg1, %c0_i32_0 : i32, i32, i32, i32
  }
  func.func @transform_3(%arg0: i32, %arg1: i32) -> (i32, i32, i32, i32, i32) {
    %c0_i32 = arith.constant 0 : i32
    %c0_i32_0 = arith.constant 0 : i32
    %c0_i32_1 = arith.constant 0 : i32
    %c0_i32_2 = arith.constant 0 : i32
    return %arg0, %c0_i32, %c0_i32_0, %arg1, %c0_i32_1 : i32, i32, i32, i32, i32
  }
}

module attributes {stable_mosaic.version = 11 : i64} {
  func.func @_std_kernel_planar(%arg0: i32, %arg1: i32, %arg2: memref<1x2x4x8x16xf32, #tpu.memory_space<vmem>>, %arg3: memref<1x2x4x8x16xf32, #tpu.memory_space<vmem>>, %arg4: memref<1x2x8x16xf32, #tpu.memory_space<vmem>>, %arg5: memref<1x4x2x8x16xf32, #tpu.memory_space<vmem>>) attributes {dimension_semantics = [#tpu.dimension_semantics<parallel>, #tpu.dimension_semantics<parallel>], iteration_bounds = array<i64: 2, 2>, scalar_prefetch = 0 : i64, scratch_operands = 0 : i64, tpu.core_type = #tpu.core_type<tc>, window_params = [{transform_indices = @transform_0, window_bounds = array<i64: 1, 2, 4, 8, 16>}, {transform_indices = @transform_1, window_bounds = array<i64: 1, 2, 4, 8, 16>}, {transform_indices = @transform_2, window_bounds = array<i64: 1, 2, 8, 16>}, {transform_indices = @transform_3, window_bounds = array<i64: 1, 4, 2, 8, 16>}]} {
    %cst = arith.constant 0.000000e+00 : f32
    %0 = vector.broadcast %cst : f32 to vector<8x16xf32>
    %c0 = arith.constant 0 : index
    %c0_0 = arith.constant 0 : index
    %c0_1 = arith.constant 0 : index
    %c0_2 = arith.constant 0 : index
    %c0_3 = arith.constant 0 : index
    %1 = vector.load %arg2[%c0, %c0_0, %c0_1, %c0_2, %c0_3] : memref<1x2x4x8x16xf32, #tpu.memory_space<vmem>>, vector<1x1x1x8x16xf32>
    %2 = vector.shape_cast %1 : vector<1x1x1x8x16xf32> to vector<8x16xf32>
    %c0_4 = arith.constant 0 : index
    %c1 = arith.constant 1 : index
    %c0_5 = arith.constant 0 : index
    %c0_6 = arith.constant 0 : index
    %c0_7 = arith.constant 0 : index
    %3 = vector.load %arg2[%c0_4, %c1, %c0_5, %c0_6, %c0_7] : memref<1x2x4x8x16xf32, #tpu.memory_space<vmem>>, vector<1x1x1x8x16xf32>
    %4 = vector.shape_cast %3 : vector<1x1x1x8x16xf32> to vector<8x16xf32>
    %c0_8 = arith.constant 0 : index
    %c0_9 = arith.constant 0 : index
    %c0_10 = arith.constant 0 : index
    %c0_11 = arith.constant 0 : index
    %c0_12 = arith.constant 0 : index
    %5 = vector.load %arg3[%c0_8, %c0_9, %c0_10, %c0_11, %c0_12] : memref<1x2x4x8x16xf32, #tpu.memory_space<vmem>>, vector<1x1x1x8x16xf32>
    %6 = vector.shape_cast %5 : vector<1x1x1x8x16xf32> to vector<8x16xf32>
    %c0_13 = arith.constant 0 : index
    %c1_14 = arith.constant 1 : index
    %c0_15 = arith.constant 0 : index
    %c0_16 = arith.constant 0 : index
    %c0_17 = arith.constant 0 : index
    %7 = vector.load %arg3[%c0_13, %c1_14, %c0_15, %c0_16, %c0_17] : memref<1x2x4x8x16xf32, #tpu.memory_space<vmem>>, vector<1x1x1x8x16xf32>
    %8 = vector.shape_cast %7 : vector<1x1x1x8x16xf32> to vector<8x16xf32>
    %9 = arith.mulf %2, %6 : vector<8x16xf32>
    %10 = arith.mulf %4, %8 : vector<8x16xf32>
    %11 = arith.addf %9, %10 : vector<8x16xf32>
    %12 = arith.addf %0, %11 : vector<8x16xf32>
    %13 = arith.mulf %4, %6 : vector<8x16xf32>
    %14 = arith.mulf %2, %8 : vector<8x16xf32>
    %15 = arith.subf %13, %14 : vector<8x16xf32>
    %16 = arith.addf %0, %15 : vector<8x16xf32>
    %c0_18 = arith.constant 0 : index
    %c0_19 = arith.constant 0 : index
    %c1_20 = arith.constant 1 : index
    %c0_21 = arith.constant 0 : index
    %c0_22 = arith.constant 0 : index
    %17 = vector.load %arg2[%c0_18, %c0_19, %c1_20, %c0_21, %c0_22] : memref<1x2x4x8x16xf32, #tpu.memory_space<vmem>>, vector<1x1x1x8x16xf32>
    %18 = vector.shape_cast %17 : vector<1x1x1x8x16xf32> to vector<8x16xf32>
    %c0_23 = arith.constant 0 : index
    %c1_24 = arith.constant 1 : index
    %c1_25 = arith.constant 1 : index
    %c0_26 = arith.constant 0 : index
    %c0_27 = arith.constant 0 : index
    %19 = vector.load %arg2[%c0_23, %c1_24, %c1_25, %c0_26, %c0_27] : memref<1x2x4x8x16xf32, #tpu.memory_space<vmem>>, vector<1x1x1x8x16xf32>
    %20 = vector.shape_cast %19 : vector<1x1x1x8x16xf32> to vector<8x16xf32>
    %c0_28 = arith.constant 0 : index
    %c0_29 = arith.constant 0 : index
    %c1_30 = arith.constant 1 : index
    %c0_31 = arith.constant 0 : index
    %c0_32 = arith.constant 0 : index
    %21 = vector.load %arg3[%c0_28, %c0_29, %c1_30, %c0_31, %c0_32] : memref<1x2x4x8x16xf32, #tpu.memory_space<vmem>>, vector<1x1x1x8x16xf32>
    %22 = vector.shape_cast %21 : vector<1x1x1x8x16xf32> to vector<8x16xf32>
    %c0_33 = arith.constant 0 : index
    %c1_34 = arith.constant 1 : index
    %c1_35 = arith.constant 1 : index
    %c0_36 = arith.constant 0 : index
    %c0_37 = arith.constant 0 : index
    %23 = vector.load %arg3[%c0_33, %c1_34, %c1_35, %c0_36, %c0_37] : memref<1x2x4x8x16xf32, #tpu.memory_space<vmem>>, vector<1x1x1x8x16xf32>
    %24 = vector.shape_cast %23 : vector<1x1x1x8x16xf32> to vector<8x16xf32>
    %25 = arith.mulf %18, %22 : vector<8x16xf32>
    %26 = arith.mulf %20, %24 : vector<8x16xf32>
    %27 = arith.addf %25, %26 : vector<8x16xf32>
    %28 = arith.addf %12, %27 : vector<8x16xf32>
    %29 = arith.mulf %20, %22 : vector<8x16xf32>
    %30 = arith.mulf %18, %24 : vector<8x16xf32>
    %31 = arith.subf %29, %30 : vector<8x16xf32>
    %32 = arith.addf %16, %31 : vector<8x16xf32>
    %c0_38 = arith.constant 0 : index
    %c0_39 = arith.constant 0 : index
    %c2 = arith.constant 2 : index
    %c0_40 = arith.constant 0 : index
    %c0_41 = arith.constant 0 : index
    %33 = vector.load %arg2[%c0_38, %c0_39, %c2, %c0_40, %c0_41] : memref<1x2x4x8x16xf32, #tpu.memory_space<vmem>>, vector<1x1x1x8x16xf32>
    %34 = vector.shape_cast %33 : vector<1x1x1x8x16xf32> to vector<8x16xf32>
    %c0_42 = arith.constant 0 : index
    %c1_43 = arith.constant 1 : index
    %c2_44 = arith.constant 2 : index
    %c0_45 = arith.constant 0 : index
    %c0_46 = arith.constant 0 : index
    %35 = vector.load %arg2[%c0_42, %c1_43, %c2_44, %c0_45, %c0_46] : memref<1x2x4x8x16xf32, #tpu.memory_space<vmem>>, vector<1x1x1x8x16xf32>
    %36 = vector.shape_cast %35 : vector<1x1x1x8x16xf32> to vector<8x16xf32>
    %c0_47 = arith.constant 0 : index
    %c0_48 = arith.constant 0 : index
    %c2_49 = arith.constant 2 : index
    %c0_50 = arith.constant 0 : index
    %c0_51 = arith.constant 0 : index
    %37 = vector.load %arg3[%c0_47, %c0_48, %c2_49, %c0_50, %c0_51] : memref<1x2x4x8x16xf32, #tpu.memory_space<vmem>>, vector<1x1x1x8x16xf32>
    %38 = vector.shape_cast %37 : vector<1x1x1x8x16xf32> to vector<8x16xf32>
    %c0_52 = arith.constant 0 : index
    %c1_53 = arith.constant 1 : index
    %c2_54 = arith.constant 2 : index
    %c0_55 = arith.constant 0 : index
    %c0_56 = arith.constant 0 : index
    %39 = vector.load %arg3[%c0_52, %c1_53, %c2_54, %c0_55, %c0_56] : memref<1x2x4x8x16xf32, #tpu.memory_space<vmem>>, vector<1x1x1x8x16xf32>
    %40 = vector.shape_cast %39 : vector<1x1x1x8x16xf32> to vector<8x16xf32>
    %41 = arith.mulf %34, %38 : vector<8x16xf32>
    %42 = arith.mulf %36, %40 : vector<8x16xf32>
    %43 = arith.addf %41, %42 : vector<8x16xf32>
    %44 = arith.addf %28, %43 : vector<8x16xf32>
    %45 = arith.mulf %36, %38 : vector<8x16xf32>
    %46 = arith.mulf %34, %40 : vector<8x16xf32>
    %47 = arith.subf %45, %46 : vector<8x16xf32>
    %48 = arith.addf %32, %47 : vector<8x16xf32>
    %c0_57 = arith.constant 0 : index
    %c0_58 = arith.constant 0 : index
    %c3 = arith.constant 3 : index
    %c0_59 = arith.constant 0 : index
    %c0_60 = arith.constant 0 : index
    %49 = vector.load %arg2[%c0_57, %c0_58, %c3, %c0_59, %c0_60] : memref<1x2x4x8x16xf32, #tpu.memory_space<vmem>>, vector<1x1x1x8x16xf32>
    %50 = vector.shape_cast %49 : vector<1x1x1x8x16xf32> to vector<8x16xf32>
    %c0_61 = arith.constant 0 : index
    %c1_62 = arith.constant 1 : index
    %c3_63 = arith.constant 3 : index
    %c0_64 = arith.constant 0 : index
    %c0_65 = arith.constant 0 : index
    %51 = vector.load %arg2[%c0_61, %c1_62, %c3_63, %c0_64, %c0_65] : memref<1x2x4x8x16xf32, #tpu.memory_space<vmem>>, vector<1x1x1x8x16xf32>
    %52 = vector.shape_cast %51 : vector<1x1x1x8x16xf32> to vector<8x16xf32>
    %c0_66 = arith.constant 0 : index
    %c0_67 = arith.constant 0 : index
    %c3_68 = arith.constant 3 : index
    %c0_69 = arith.constant 0 : index
    %c0_70 = arith.constant 0 : index
    %53 = vector.load %arg3[%c0_66, %c0_67, %c3_68, %c0_69, %c0_70] : memref<1x2x4x8x16xf32, #tpu.memory_space<vmem>>, vector<1x1x1x8x16xf32>
    %54 = vector.shape_cast %53 : vector<1x1x1x8x16xf32> to vector<8x16xf32>
    %c0_71 = arith.constant 0 : index
    %c1_72 = arith.constant 1 : index
    %c3_73 = arith.constant 3 : index
    %c0_74 = arith.constant 0 : index
    %c0_75 = arith.constant 0 : index
    %55 = vector.load %arg3[%c0_71, %c1_72, %c3_73, %c0_74, %c0_75] : memref<1x2x4x8x16xf32, #tpu.memory_space<vmem>>, vector<1x1x1x8x16xf32>
    %56 = vector.shape_cast %55 : vector<1x1x1x8x16xf32> to vector<8x16xf32>
    %57 = arith.mulf %50, %54 : vector<8x16xf32>
    %58 = arith.mulf %52, %56 : vector<8x16xf32>
    %59 = arith.addf %57, %58 : vector<8x16xf32>
    %60 = arith.addf %44, %59 : vector<8x16xf32>
    %61 = arith.mulf %52, %54 : vector<8x16xf32>
    %62 = arith.mulf %50, %56 : vector<8x16xf32>
    %63 = arith.subf %61, %62 : vector<8x16xf32>
    %64 = arith.addf %48, %63 : vector<8x16xf32>
    %c0_76 = arith.constant 0 : index
    %c0_77 = arith.constant 0 : index
    %c0_78 = arith.constant 0 : index
    %c0_79 = arith.constant 0 : index
    %65 = vector.load %arg4[%c0_76, %c0_77, %c0_78, %c0_79] : memref<1x2x8x16xf32, #tpu.memory_space<vmem>>, vector<1x1x8x16xf32>
    %66 = vector.shape_cast %65 : vector<1x1x8x16xf32> to vector<8x16xf32>
    %67 = vector.shape_cast %60 : vector<8x16xf32> to vector<1x1x8x16xf32>
    tpu.vector_store %arg4[%c0_76, %c0_77, %c0_78, %c0_79], %67 {strides = array<i32>} : memref<1x2x8x16xf32, #tpu.memory_space<vmem>>, vector<1x1x8x16xf32>,
    %c0_80 = arith.constant 0 : index
    %c1_81 = arith.constant 1 : index
    %c0_82 = arith.constant 0 : index
    %c0_83 = arith.constant 0 : index
    %68 = vector.load %arg4[%c0_80, %c1_81, %c0_82, %c0_83] : memref<1x2x8x16xf32, #tpu.memory_space<vmem>>, vector<1x1x8x16xf32>
    %69 = vector.shape_cast %68 : vector<1x1x8x16xf32> to vector<8x16xf32>
    %70 = vector.shape_cast %64 : vector<8x16xf32> to vector<1x1x8x16xf32>
    tpu.vector_store %arg4[%c0_80, %c1_81, %c0_82, %c0_83], %70 {strides = array<i32>} : memref<1x2x8x16xf32, #tpu.memory_space<vmem>>, vector<1x1x8x16xf32>,
    %c0_84 = arith.constant 0 : index
    %c0_85 = arith.constant 0 : index
    %c0_86 = arith.constant 0 : index
    %c0_87 = arith.constant 0 : index
    %c0_88 = arith.constant 0 : index
    %71 = vector.load %arg3[%c0_84, %c0_85, %c0_86, %c0_87, %c0_88] : memref<1x2x4x8x16xf32, #tpu.memory_space<vmem>>, vector<1x1x1x8x16xf32>
    %72 = vector.shape_cast %71 : vector<1x1x1x8x16xf32> to vector<8x16xf32>
    %c0_89 = arith.constant 0 : index
    %c1_90 = arith.constant 1 : index
    %c0_91 = arith.constant 0 : index
    %c0_92 = arith.constant 0 : index
    %c0_93 = arith.constant 0 : index
    %73 = vector.load %arg3[%c0_89, %c1_90, %c0_91, %c0_92, %c0_93] : memref<1x2x4x8x16xf32, #tpu.memory_space<vmem>>, vector<1x1x1x8x16xf32>
    %74 = vector.shape_cast %73 : vector<1x1x1x8x16xf32> to vector<8x16xf32>
    %75 = arith.mulf %60, %72 : vector<8x16xf32>
    %76 = arith.mulf %64, %74 : vector<8x16xf32>
    %77 = arith.subf %75, %76 : vector<8x16xf32>
    %78 = arith.subf %60, %77 : vector<8x16xf32>
    %c0_94 = arith.constant 0 : index
    %c0_95 = arith.constant 0 : index
    %c0_96 = arith.constant 0 : index
    %c0_97 = arith.constant 0 : index
    %c0_98 = arith.constant 0 : index
    %79 = vector.load %arg5[%c0_94, %c0_95, %c0_96, %c0_97, %c0_98] : memref<1x4x2x8x16xf32, #tpu.memory_space<vmem>>, vector<1x1x1x8x16xf32>
    %80 = vector.shape_cast %79 : vector<1x1x1x8x16xf32> to vector<8x16xf32>
    %81 = vector.shape_cast %78 : vector<8x16xf32> to vector<1x1x1x8x16xf32>
    tpu.vector_store %arg5[%c0_94, %c0_95, %c0_96, %c0_97, %c0_98], %81 {strides = array<i32>} : memref<1x4x2x8x16xf32, #tpu.memory_space<vmem>>, vector<1x1x1x8x16xf32>,
    %82 = arith.mulf %60, %74 : vector<8x16xf32>
    %83 = arith.mulf %64, %72 : vector<8x16xf32>
    %84 = arith.addf %82, %83 : vector<8x16xf32>
    %85 = arith.subf %64, %84 : vector<8x16xf32>
    %c0_99 = arith.constant 0 : index
    %c0_100 = arith.constant 0 : index
    %c1_101 = arith.constant 1 : index
    %c0_102 = arith.constant 0 : index
    %c0_103 = arith.constant 0 : index
    %86 = vector.load %arg5[%c0_99, %c0_100, %c1_101, %c0_102, %c0_103] : memref<1x4x2x8x16xf32, #tpu.memory_space<vmem>>, vector<1x1x1x8x16xf32>
    %87 = vector.shape_cast %86 : vector<1x1x1x8x16xf32> to vector<8x16xf32>
    %88 = vector.shape_cast %85 : vector<8x16xf32> to vector<1x1x1x8x16xf32>
    tpu.vector_store %arg5[%c0_99, %c0_100, %c1_101, %c0_102, %c0_103], %88 {strides = array<i32>} : memref<1x4x2x8x16xf32, #tpu.memory_space<vmem>>, vector<1x1x1x8x16xf32>,
    %c0_104 = arith.constant 0 : index
    %c0_105 = arith.constant 0 : index
    %c1_106 = arith.constant 1 : index
    %c0_107 = arith.constant 0 : index
    %c0_108 = arith.constant 0 : index
    %89 = vector.load %arg3[%c0_104, %c0_105, %c1_106, %c0_107, %c0_108] : memref<1x2x4x8x16xf32, #tpu.memory_space<vmem>>, vector<1x1x1x8x16xf32>
    %90 = vector.shape_cast %89 : vector<1x1x1x8x16xf32> to vector<8x16xf32>
    %c0_109 = arith.constant 0 : index
    %c1_110 = arith.constant 1 : index
    %c1_111 = arith.constant 1 : index
    %c0_112 = arith.constant 0 : index
    %c0_113 = arith.constant 0 : index
    %91 = vector.load %arg3[%c0_109, %c1_110, %c1_111, %c0_112, %c0_113] : memref<1x2x4x8x16xf32, #tpu.memory_space<vmem>>, vector<1x1x1x8x16xf32>
    %92 = vector.shape_cast %91 : vector<1x1x1x8x16xf32> to vector<8x16xf32>
    %93 = arith.mulf %60, %90 : vector<8x16xf32>
    %94 = arith.mulf %64, %92 : vector<8x16xf32>
    %95 = arith.subf %93, %94 : vector<8x16xf32>
    %96 = arith.subf %60, %95 : vector<8x16xf32>
    %c0_114 = arith.constant 0 : index
    %c1_115 = arith.constant 1 : index
    %c0_116 = arith.constant 0 : index
    %c0_117 = arith.constant 0 : index
    %c0_118 = arith.constant 0 : index
    %97 = vector.load %arg5[%c0_114, %c1_115, %c0_116, %c0_117, %c0_118] : memref<1x4x2x8x16xf32, #tpu.memory_space<vmem>>, vector<1x1x1x8x16xf32>
    %98 = vector.shape_cast %97 : vector<1x1x1x8x16xf32> to vector<8x16xf32>
    %99 = vector.shape_cast %96 : vector<8x16xf32> to vector<1x1x1x8x16xf32>
    tpu.vector_store %arg5[%c0_114, %c1_115, %c0_116, %c0_117, %c0_118], %99 {strides = array<i32>} : memref<1x4x2x8x16xf32, #tpu.memory_space<vmem>>, vector<1x1x1x8x16xf32>,
    %100 = arith.mulf %60, %92 : vector<8x16xf32>
    %101 = arith.mulf %64, %90 : vector<8x16xf32>
    %102 = arith.addf %100, %101 : vector<8x16xf32>
    %103 = arith.subf %64, %102 : vector<8x16xf32>
    %c0_119 = arith.constant 0 : index
    %c1_120 = arith.constant 1 : index
    %c1_121 = arith.constant 1 : index
    %c0_122 = arith.constant 0 : index
    %c0_123 = arith.constant 0 : index
    %104 = vector.load %arg5[%c0_119, %c1_120, %c1_121, %c0_122, %c0_123] : memref<1x4x2x8x16xf32, #tpu.memory_space<vmem>>, vector<1x1x1x8x16xf32>
    %105 = vector.shape_cast %104 : vector<1x1x1x8x16xf32> to vector<8x16xf32>
    %106 = vector.shape_cast %103 : vector<8x16xf32> to vector<1x1x1x8x16xf32>
    tpu.vector_store %arg5[%c0_119, %c1_120, %c1_121, %c0_122, %c0_123], %106 {strides = array<i32>} : memref<1x4x2x8x16xf32, #tpu.memory_space<vmem>>, vector<1x1x1x8x16xf32>,
    %c0_124 = arith.constant 0 : index
    %c0_125 = arith.constant 0 : index
    %c2_126 = arith.constant 2 : index
    %c0_127 = arith.constant 0 : index
    %c0_128 = arith.constant 0 : index
    %107 = vector.load %arg3[%c0_124, %c0_125, %c2_126, %c0_127, %c0_128] : memref<1x2x4x8x16xf32, #tpu.memory_space<vmem>>, vector<1x1x1x8x16xf32>
    %108 = vector.shape_cast %107 : vector<1x1x1x8x16xf32> to vector<8x16xf32>
    %c0_129 = arith.constant 0 : index
    %c1_130 = arith.constant 1 : index
    %c2_131 = arith.constant 2 : index
    %c0_132 = arith.constant 0 : index
    %c0_133 = arith.constant 0 : index
    %109 = vector.load %arg3[%c0_129, %c1_130, %c2_131, %c0_132, %c0_133] : memref<1x2x4x8x16xf32, #tpu.memory_space<vmem>>, vector<1x1x1x8x16xf32>
    %110 = vector.shape_cast %109 : vector<1x1x1x8x16xf32> to vector<8x16xf32>
    %111 = arith.mulf %60, %108 : vector<8x16xf32>
    %112 = arith.mulf %64, %110 : vector<8x16xf32>
    %113 = arith.subf %111, %112 : vector<8x16xf32>
    %114 = arith.subf %60, %113 : vector<8x16xf32>
    %c0_134 = arith.constant 0 : index
    %c2_135 = arith.constant 2 : index
    %c0_136 = arith.constant 0 : index
    %c0_137 = arith.constant 0 : index
    %c0_138 = arith.constant 0 : index
    %115 = vector.load %arg5[%c0_134, %c2_135, %c0_136, %c0_137, %c0_138] : memref<1x4x2x8x16xf32, #tpu.memory_space<vmem>>, vector<1x1x1x8x16xf32>
    %116 = vector.shape_cast %115 : vector<1x1x1x8x16xf32> to vector<8x16xf32>
    %117 = vector.shape_cast %114 : vector<8x16xf32> to vector<1x1x1x8x16xf32>
    tpu.vector_store %arg5[%c0_134, %c2_135, %c0_136, %c0_137, %c0_138], %117 {strides = array<i32>} : memref<1x4x2x8x16xf32, #tpu.memory_space<vmem>>, vector<1x1x1x8x16xf32>,
    %118 = arith.mulf %60, %110 : vector<8x16xf32>
    %119 = arith.mulf %64, %108 : vector<8x16xf32>
    %120 = arith.addf %118, %119 : vector<8x16xf32>
    %121 = arith.subf %64, %120 : vector<8x16xf32>
    %c0_139 = arith.constant 0 : index
    %c2_140 = arith.constant 2 : index
    %c1_141 = arith.constant 1 : index
    %c0_142 = arith.constant 0 : index
    %c0_143 = arith.constant 0 : index
    %122 = vector.load %arg5[%c0_139, %c2_140, %c1_141, %c0_142, %c0_143] : memref<1x4x2x8x16xf32, #tpu.memory_space<vmem>>, vector<1x1x1x8x16xf32>
    %123 = vector.shape_cast %122 : vector<1x1x1x8x16xf32> to vector<8x16xf32>
    %124 = vector.shape_cast %121 : vector<8x16xf32> to vector<1x1x1x8x16xf32>
    tpu.vector_store %arg5[%c0_139, %c2_140, %c1_141, %c0_142, %c0_143], %124 {strides = array<i32>} : memref<1x4x2x8x16xf32, #tpu.memory_space<vmem>>, vector<1x1x1x8x16xf32>,
    %c0_144 = arith.constant 0 : index
    %c0_145 = arith.constant 0 : index
    %c3_146 = arith.constant 3 : index
    %c0_147 = arith.constant 0 : index
    %c0_148 = arith.constant 0 : index
    %125 = vector.load %arg3[%c0_144, %c0_145, %c3_146, %c0_147, %c0_148] : memref<1x2x4x8x16xf32, #tpu.memory_space<vmem>>, vector<1x1x1x8x16xf32>
    %126 = vector.shape_cast %125 : vector<1x1x1x8x16xf32> to vector<8x16xf32>
    %c0_149 = arith.constant 0 : index
    %c1_150 = arith.constant 1 : index
    %c3_151 = arith.constant 3 : index
    %c0_152 = arith.constant 0 : index
    %c0_153 = arith.constant 0 : index
    %127 = vector.load %arg3[%c0_149, %c1_150, %c3_151, %c0_152, %c0_153] : memref<1x2x4x8x16xf32, #tpu.memory_space<vmem>>, vector<1x1x1x8x16xf32>
    %128 = vector.shape_cast %127 : vector<1x1x1x8x16xf32> to vector<8x16xf32>
    %129 = arith.mulf %60, %126 : vector<8x16xf32>
    %130 = arith.mulf %64, %128 : vector<8x16xf32>
    %131 = arith.subf %129, %130 : vector<8x16xf32>
    %132 = arith.subf %60, %131 : vector<8x16xf32>
    %c0_154 = arith.constant 0 : index
    %c3_155 = arith.constant 3 : index
    %c0_156 = arith.constant 0 : index
    %c0_157 = arith.constant 0 : index
    %c0_158 = arith.constant 0 : index
    %133 = vector.load %arg5[%c0_154, %c3_155, %c0_156, %c0_157, %c0_158] : memref<1x4x2x8x16xf32, #tpu.memory_space<vmem>>, vector<1x1x1x8x16xf32>
    %134 = vector.shape_cast %133 : vector<1x1x1x8x16xf32> to vector<8x16xf32>
    %135 = vector.shape_cast %132 : vector<8x16xf32> to vector<1x1x1x8x16xf32>
    tpu.vector_store %arg5[%c0_154, %c3_155, %c0_156, %c0_157, %c0_158], %135 {strides = array<i32>} : memref<1x4x2x8x16xf32, #tpu.memory_space<vmem>>, vector<1x1x1x8x16xf32>,
    %136 = arith.mulf %60, %128 : vector<8x16xf32>
    %137 = arith.mulf %64, %126 : vector<8x16xf32>
    %138 = arith.addf %136, %137 : vector<8x16xf32>
    %139 = arith.subf %64, %138 : vector<8x16xf32>
    %c0_159 = arith.constant 0 : index
    %c3_160 = arith.constant 3 : index
    %c1_161 = arith.constant 1 : index
    %c0_162 = arith.constant 0 : index
    %c0_163 = arith.constant 0 : index
    %140 = vector.load %arg5[%c0_159, %c3_160, %c1_161, %c0_162, %c0_163] : memref<1x4x2x8x16xf32, #tpu.memory_space<vmem>>, vector<1x1x1x8x16xf32>
    %141 = vector.shape_cast %140 : vector<1x1x1x8x16xf32> to vector<8x16xf32>
    %142 = vector.shape_cast %139 : vector<8x16xf32> to vector<1x1x1x8x16xf32>
    tpu.vector_store %arg5[%c0_159, %c3_160, %c1_161, %c0_162, %c0_163], %142 {strides = array<i32>} : memref<1x4x2x8x16xf32, #tpu.memory_space<vmem>>, vector<1x1x1x8x16xf32>,
    return
  }
  func.func @transform_0(%arg0: i32, %arg1: i32) -> (i32, i32, i32, i32, i32) {
    %c0_i32 = arith.constant 0 : i32
    %c0_i32_0 = arith.constant 0 : i32
    %c0_i32_1 = arith.constant 0 : i32
    %c0_i32_2 = arith.constant 0 : i32
    return %arg0, %c0_i32, %c0_i32_0, %arg1, %c0_i32_1 : i32, i32, i32, i32, i32
  }
  func.func @transform_1(%arg0: i32, %arg1: i32) -> (i32, i32, i32, i32, i32) {
    %c0_i32 = arith.constant 0 : i32
    %c0_i32_0 = arith.constant 0 : i32
    %c0_i32_1 = arith.constant 0 : i32
    %c0_i32_2 = arith.constant 0 : i32
    return %arg0, %c0_i32, %c0_i32_0, %arg1, %c0_i32_1 : i32, i32, i32, i32, i32
  }
  func.func @transform_2(%arg0: i32, %arg1: i32) -> (i32, i32, i32, i32) {
    %c0_i32 = arith.constant 0 : i32
    %c0_i32_0 = arith.constant 0 : i32
    %c0_i32_1 = arith.constant 0 : i32
    return %arg0, %c0_i32, %arg1, %c0_i32_0 : i32, i32, i32, i32
  }
  func.func @transform_3(%arg0: i32, %arg1: i32) -> (i32, i32, i32, i32, i32) {
    %c0_i32 = arith.constant 0 : i32
    %c0_i32_0 = arith.constant 0 : i32
    %c0_i32_1 = arith.constant 0 : i32
    %c0_i32_2 = arith.constant 0 : i32
    return %arg0, %c0_i32, %c0_i32_0, %arg1, %c0_i32_1 : i32, i32, i32, i32, i32
  }
}

</mosaic_0001>

<llo_original>
// kernel: tpu_custom_call.1
$region0: #{tpu_custom_call.1}
  #allocation0 [shape = 'u32[]', space=smem, size = 0x4, offset = 0x4, fixed_abs, tag = 'smem constant byte address 0x4 - core index']
  #allocation1 [shape = 'u32[72,128]{1,0:T(1,128)}', space=vmem, size = 0x9000, scoped, tag = 'internal scratch']
  %s0 = inlined_call_operand.hbm [shape: f32[2,2,4,16,16], index: 0, kind: input, shape index: {}]
  %s1 = inlined_call_operand.hbm [shape: f32[2,2,4,16,16], index: 1, kind: input, shape index: {}]
  %s2 = inlined_call_operand.hbm [shape: f32[2,2,16,16], index: 2, kind: output, shape index: {0}]
  %s3 = inlined_call_operand.hbm [shape: f32[2,4,2,16,16], index: 3, kind: output, shape index: {1}]
  %4 = xla_tuple %s2, %s3
  %s5 = sld [smem:[#allocation0]]
  $region57: #{tpu_custom_call.1} parent=0
    _
  %s7 = ssub.s32 1, %s5
  %s8 = scalar_select 0, %s7, %s5
  $region1: #{tpu_custom_call.1} parent=0
    #allocation2 [shape = 'u8[65536]{0}', space=vmem, size = 0x10000, scoped, tag = 'input window, operand 0']
    #allocation3 [shape = 's32[2]{0}', space=sflag, size = 0x8, scoped, tag = 'scoped memory for tpu_custom_call.1']
    #allocation4 [shape = 's32[2]{0}', space=sflag, size = 0x8, scoped, tag = 'scoped memory for tpu_custom_call.1']
    #allocation5 [shape = 'u8[65536]{0}', space=vmem, size = 0x10000, scoped, tag = 'input window, operand 1']
    #allocation6 [shape = 's32[2]{0}', space=sflag, size = 0x8, scoped, tag = 'scoped memory for tpu_custom_call.1']
    #allocation7 [shape = 'u8[16384]{0}', space=vmem, size = 0x4000, scoped, tag = 'output window, operand 0']
    #allocation8 [shape = 'u8[65536]{0}', space=vmem, size = 0x10000, scoped, tag = 'output window, operand 1']
    #allocation9 [shape = 's32[2]{0}', space=sflag, size = 0x8, scoped, tag = 'scoped memory for tpu_custom_call.1']
    %9 = vsyncpa [#allocation3], 0
    %s10 = scalar_lea.sflag [#allocation3], 1
    %11 = vsyncpa %s10, 0
    %12 = vsyncpa [#allocation6], 0
    %s13 = scalar_lea.sflag [#allocation6], 1
    %14 = vsyncpa %s13, 0
    %15 = vsyncpa [#allocation4], 0
    %s16 = scalar_lea.sflag [#allocation4], 1
    %17 = vsyncpa %s16, 0
    %18 = vsyncpa [#allocation9], 0
    %s19 = scalar_lea.sflag [#allocation9], 1
    %20 = vsyncpa %s19, 0
    loop: start=0, step=1, limit=6
    $region2: #{tpu_custom_call.1} parent=1 // loop_pre_header
      _
    $region3: #{tpu_custom_call.1} parent=1 // loop_header
      %s22 = sphi 0, %s26
      %p23 = scmp.ge.s32.totalorder %s22, 6
      %s29 = sphi 0, %s41
      %s30 = sphi 0, %s37
      %s31 = sphi 0, %s29
      %s32 = sphi 0, %s30
      %s33 = sphi 0, %s31
      %s34 = sphi 0, %s32
      %s46 = sphi 0, %s48
      %s49 = sphi 0, %s46
      %s50 = sphi 0, %s49
      %s66 = sphi 0, %s50
      %s74 = sphi 0, %s76
      %s77 = sphi 0, %s74
      %s78 = sphi 0, %s77
      %s94 = sphi 0, %s78
      %s102 = sphi 0, %s104
      %s105 = sphi 0, %s102
      %s106 = sphi 0, %s105
      %s122 = sphi 0, %s106
      %s130 = sphi 0, %s132
      %s133 = sphi 0, %s130
      %s134 = sphi 0, %s133
      %s150 = sphi 0, %s134
    $region4: #{tpu_custom_call.1} parent=1 // loop_header_branch
      %25 = sbr.rel (%p23) target = $region8
    $region5: #{tpu_custom_call.1} parent=1 // loop_body
      %s27 = ssub.s32 %s22, 1
      %s28 = ssub.s32 %s22, 2
      %s35 = sadd.s32 1, %s30
      %p36 = scmp.ge.s32.totalorder %s35, 2
      %s37 = scalar_select %p36, 0, %s35
      %s38 = sadd.s32 1, %s29
      %s39 = scalar_select %p36, %s38, %s29
      %p40 = scmp.ge.s32.totalorder %s39, 2
      %s41 = scalar_select %p40, 0, %s39
      %s42 = ssub.s32 %s29, %s41
      %s43 = ssub.s32 %s30, %s37
      %s44 = sor.u32 %s42, %s43
      %p45 = scmp.eq.s32.totalorder %s44, 0
      %s47 = sadd.s32 %s46, 1
      %s48 = scalar_select %p45, %s46, %s47
      %p51 = pneg %p45
      %p52 = scmp.eq.s32.totalorder %s22, 3
      %p53 = por %p51, %p52
      %p54 = scmp.ne.s32.totalorder %s46, %s49
      %p55 = scmp.eq.s32.totalorder %s22, 0
      %p56 = por %p54, %p55
      %p57 = scmp.ne.s32.totalorder %s46, %s49
      %p58 = scmp.eq.s32.totalorder %s27, 3
      %p59 = por %p57, %p58
      %p60 = scmp.ne.s32.totalorder %s49, %s50
      %p61 = scmp.eq.s32.totalorder %s27, 0
      %p62 = por %p60, %p61
      %p63 = scmp.ne.s32.totalorder %s49, %s50
      %p64 = scmp.eq.s32.totalorder %s28, 3
      %p65 = por %p63, %p64
      %p67 = scmp.ne.s32.totalorder %s50, %s66
      %p68 = scmp.eq.s32.totalorder %s28, 0
      %p69 = por %p67, %p68
      %s70 = ssub.s32 %s29, %s41
      %s71 = ssub.s32 %s30, %s37
      %s72 = sor.u32 %s70, %s71
      %p73 = scmp.eq.s32.totalorder %s72, 0
      %s75 = sadd.s32 %s74, 1
      %s76 = scalar_select %p73, %s74, %s75
      %p79 = pneg %p73
      %p80 = scmp.eq.s32.totalorder %s22, 3
      %p81 = por %p79, %p80
      %p82 = scmp.ne.s32.totalorder %s74, %s77
      %p83 = scmp.eq.s32.totalorder %s22, 0
      %p84 = por %p82, %p83
      %p85 = scmp.ne.s32.totalorder %s74, %s77
      %p86 = scmp.eq.s32.totalorder %s27, 3
      %p87 = por %p85, %p86
      %p88 = scmp.ne.s32.totalorder %s77, %s78
      %p89 = scmp.eq.s32.totalorder %s27, 0
      %p90 = por %p88, %p89
      %p91 = scmp.ne.s32.totalorder %s77, %s78
      %p92 = scmp.eq.s32.totalorder %s28, 3
      %p93 = por %p91, %p92
      %p95 = scmp.ne.s32.totalorder %s78, %s94
      %p96 = scmp.eq.s32.totalorder %s28, 0
      %p97 = por %p95, %p96
      %s98 = ssub.s32 %s29, %s41
      %s99 = ssub.s32 %s30, %s37
      %s100 = sor.u32 %s98, %s99
      %p101 = scmp.eq.s32.totalorder %s100, 0
      %s103 = sadd.s32 %s102, 1
      %s104 = scalar_select %p101, %s102, %s103
      %p107 = pneg %p101
      %p108 = scmp.eq.s32.totalorder %s22, 3
      %p109 = por %p107, %p108
      %p110 = scmp.ne.s32.totalorder %s102, %s105
      %p111 = scmp.eq.s32.totalorder %s22, 0
      %p112 = por %p110, %p111
      %p113 = scmp.ne.s32.totalorder %s102, %s105
      %p114 = scmp.eq.s32.totalorder %s27, 3
      %p115 = por %p113, %p114
      %p116 = scmp.ne.s32.totalorder %s105, %s106
      %p117 = scmp.eq.s32.totalorder %s27, 0
      %p118 = por %p116, %p117
      %p119 = scmp.ne.s32.totalorder %s105, %s106
      %p120 = scmp.eq.s32.totalorder %s28, 3
      %p121 = por %p119, %p120
      %p123 = scmp.ne.s32.totalorder %s106, %s122
      %p124 = scmp.eq.s32.totalorder %s28, 0
      %p125 = por %p123, %p124
      %s126 = ssub.s32 %s29, %s41
      %s127 = ssub.s32 %s30, %s37
      %s128 = sor.u32 %s126, %s127
      %p129 = scmp.eq.s32.totalorder %s128, 0
      %s131 = sadd.s32 %s130, 1
      %s132 = scalar_select %p129, %s130, %s131
      %p135 = pneg %p129
      %p136 = scmp.eq.s32.totalorder %s22, 3
      %p137 = por %p135, %p136
      %p138 = scmp.ne.s32.totalorder %s130, %s133
      %p139 = scmp.eq.s32.totalorder %s22, 0
      %p140 = por %p138, %p139
      %p141 = scmp.ne.s32.totalorder %s130, %s133
      %p142 = scmp.eq.s32.totalorder %s27, 3
      %p143 = por %p141, %p142
      %p144 = scmp.ne.s32.totalorder %s133, %s134
      %p145 = scmp.eq.s32.totalorder %s27, 0
      %p146 = por %p144, %p145
      %p147 = scmp.ne.s32.totalorder %s133, %s134
      %p148 = scmp.eq.s32.totalorder %s28, 3
      %p149 = por %p147, %p148
      %p151 = scmp.ne.s32.totalorder %s134, %s150
      %p152 = scmp.eq.s32.totalorder %s28, 0
      %p153 = por %p151, %p152
      %p154 = scmp.le.s32.totalorder 1, %s22
      %p155 = scmp.lt.s32.totalorder %s22, 5
      %p156 = pnand %p154, %p155
      %p157 = pneg %p156
      // Predicated region
      $region9: #{tpu_custom_call.1} parent=5 // pred_check
        _
      $region10: #{tpu_custom_call.1} parent=5 // pred_check_branch
        %159 = sbr.rel (%p156) target = $region12
      $region11: #{tpu_custom_call.1} parent=5 // pred_region
        %s160 = ssub.s32 %s22, 1
      $region12: #{tpu_custom_call.1} parent=5 // pred_fallthru
        _
      %p161 = scmp.lt.s32.totalorder %s22, 4
      // Predicated region
      $region13: #{tpu_custom_call.1} parent=5 // pred_check
        %p162 = pneg %p161
      $region14: #{tpu_custom_call.1} parent=5 // pred_check_branch
        %164 = sbr.rel (%p162) target = $region16
      $region15: #{tpu_custom_call.1} parent=5 // pred_region
        // Predicated region
        $region17: #{tpu_custom_call.1} parent=15 // pred_check
          %p165 = pneg %p56
        $region18: #{tpu_custom_call.1} parent=15 // pred_check_branch
          %167 = sbr.rel (%p165) target = $region20
        $region19: #{tpu_custom_call.1} parent=15 // pred_region
          %s168 = sand.u32 %s46, 1
          %s169 = scalar_lea.sflag [#allocation3], %s168
          %s170 = sand.u32 %s46, 1
          %s171 = smul.addr %s170, 64
          %s172 = scalar_lea.vmem [#allocation2], %s171
          %174 = vsyncadd %s169, 0
          %s175 = smul.addr %s29, 16
          %s176 = sadd.s32 %s30, %s175
          %s177 = smul.addr %s176, 8
          %s178 = scalar_lea.hbm %s0, %s177
          %s179 = sshll.u32 %s178, 4
          %s180 = int_to_ptr.hbm [resolvable:$true] %s179
          %s181 = sshll.u32 %s172, 4
          %s182 = int_to_ptr.vmem [resolvable:$true] %s181
          %187 = dma.hbm_to_vmem [thread:$0]  %s180, 1024, %s182, %s169, 256, 128, 8
        $region20: #{tpu_custom_call.1} parent=15 // pred_fallthru
          _
        // Predicated region
        $region21: #{tpu_custom_call.1} parent=15 // pred_check
          %p188 = pneg %p84
        $region22: #{tpu_custom_call.1} parent=15 // pred_check_branch
          %190 = sbr.rel (%p188) target = $region24
        $region23: #{tpu_custom_call.1} parent=15 // pred_region
          %s191 = sand.u32 %s74, 1
          %s192 = scalar_lea.sflag [#allocation6], %s191
          %s193 = sand.u32 %s74, 1
          %s194 = smul.addr %s193, 64
          %s195 = scalar_lea.vmem [#allocation5], %s194
          %197 = vsyncadd %s192, 0
          %s198 = smul.addr %s29, 16
          %s199 = sadd.s32 %s30, %s198
          %s200 = smul.addr %s199, 8
          %s201 = scalar_lea.hbm %s1, %s200
          %s202 = sshll.u32 %s201, 4
          %s203 = int_to_ptr.hbm [resolvable:$true] %s202
          %s204 = sshll.u32 %s195, 4
          %s205 = int_to_ptr.vmem [resolvable:$true] %s204
          %210 = dma.hbm_to_vmem [thread:$0]  %s203, 1024, %s205, %s192, 256, 128, 8
        $region24: #{tpu_custom_call.1} parent=15 // pred_fallthru
          _
      $region16: #{tpu_custom_call.1} parent=5 // pred_fallthru
        _
      %p211 = scmp.le.s32.totalorder 1, %s22
      %p212 = scmp.lt.s32.totalorder %s22, 5
      %p213 = pnand %p211, %p212
      %p214 = pneg %p213
      // Predicated region
      $region25: #{tpu_custom_call.1} parent=5 // pred_check
        _
      $region26: #{tpu_custom_call.1} parent=5 // pred_check_branch
        %216 = sbr.rel (%p213) target = $region28
      $region27: #{tpu_custom_call.1} parent=5 // pred_region
        %s217 = ssub.s32 %s22, 1
        %s218 = sand.u32 %s49, 1
        %s219 = scalar_lea.sflag [#allocation3], %s218
        %s220 = sand.u32 %s49, 1
        %s221 = smul.addr %s220, 64
        %s222 = scalar_lea.vmem [#allocation2], %s221
        // Predicated region
        $region29: #{tpu_custom_call.1} parent=27 // pred_check
          %p223 = pneg %p62
        $region30: #{tpu_custom_call.1} parent=27 // pred_check_branch
          %225 = sbr.rel (%p223) target = $region32
        $region31: #{tpu_custom_call.1} parent=27 // pred_region
          %227 = dma.done %s219, 1024
        $region32: #{tpu_custom_call.1} parent=27 // pred_fallthru
          _
        %s228 = sand.u32 %s77, 1
        %s229 = scalar_lea.sflag [#allocation6], %s228
        %s230 = sand.u32 %s77, 1
        %s231 = smul.addr %s230, 64
        %s232 = scalar_lea.vmem [#allocation5], %s231
        // Predicated region
        $region33: #{tpu_custom_call.1} parent=27 // pred_check
          %p233 = pneg %p90
        $region34: #{tpu_custom_call.1} parent=27 // pred_check_branch
          %235 = sbr.rel (%p233) target = $region36
        $region35: #{tpu_custom_call.1} parent=27 // pred_region
          %237 = dma.done %s229, 1024
        $region36: #{tpu_custom_call.1} parent=27 // pred_fallthru
          _
        %s238 = sand.u32 %s49, 1
        %s239 = scalar_lea.sflag [#allocation3], %s238
        %s240 = sand.u32 %s49, 1
        %s241 = smul.addr %s240, 64
        %s242 = scalar_lea.vmem [#allocation2], %s241
        %p243 = pneg %p62
        %p244 = pneg %p59
        %s245 = sand.u32 %s77, 1
        %s246 = scalar_lea.sflag [#allocation6], %s245
        %s247 = sand.u32 %s77, 1
        %s248 = smul.addr %s247, 64
        %s249 = scalar_lea.vmem [#allocation5], %s248
        %p250 = pneg %p90
        %p251 = pneg %p87
        %p252 = pneg %p118
        %p253 = pneg %p115
        %s254 = sand.u32 %s105, 1
        %s255 = scalar_lea.sflag [#allocation4], %s254
        %s256 = sand.u32 %s105, 1
        %s257 = smul.addr %s256, 16
        %s258 = scalar_lea.vmem [#allocation7], %s257
        %p259 = pneg %p146
        %p260 = pneg %p143
        %s261 = sand.u32 %s133, 1
        %s262 = scalar_lea.sflag [#allocation9], %s261
        %s263 = sand.u32 %s133, 1
        %s264 = smul.addr %s263, 64
        %s265 = scalar_lea.vmem [#allocation8], %s264
        %v266 = vld [vmem:[%s222] sm:$0xff]
        %s267 = scalar_lea.vmem %s222, 32 [#allocation2]
        %v268 = vld [vmem:[%s267] sm:$0xff]
        %v269 = vld [vmem:[%s232] sm:$0xff]
        %s270 = scalar_lea.vmem %s232, 32 [#allocation5]
        %v271 = vld [vmem:[%s270] sm:$0xff]
        %v272 = vmul.f32 %v266, %v269
        %v273 = vmul.f32 %v268, %v271
        %v274 = vadd.f32 %v272, %v273
        %v275 = vadd.f32 %v274, 0.0
        %v276 = vmul.f32 %v268, %v269
        %v277 = vmul.f32 %v266, %v271
        %v278 = vsub.f32 %v276, %v277
        %v279 = vadd.f32 %v278, 0.0
        %s280 = scalar_lea.vmem %s222, 8 [#allocation2]
        %v281 = vld [vmem:[%s280] sm:$0xff]
        %s282 = scalar_lea.vmem %s222, 40 [#allocation2]
        %v283 = vld [vmem:[%s282] sm:$0xff]
        %s284 = scalar_lea.vmem %s232, 8 [#allocation5]
        %v285 = vld [vmem:[%s284] sm:$0xff]
        %s286 = scalar_lea.vmem %s232, 40 [#allocation5]
        %v287 = vld [vmem:[%s286] sm:$0xff]
        %v288 = vmul.f32 %v281, %v285
        %v289 = vmul.f32 %v283, %v287
        %v290 = vadd.f32 %v288, %v289
        %v291 = vadd.f32 %v275, %v290
        %v292 = vmul.f32 %v283, %v285
        %v293 = vmul.f32 %v281, %v287
        %v294 = vsub.f32 %v292, %v293
        %v295 = vadd.f32 %v279, %v294
        %s296 = scalar_lea.vmem %s222, 16 [#allocation2]
        %v297 = vld [vmem:[%s296] sm:$0xff]
        %s298 = scalar_lea.vmem %s222, 48 [#allocation2]
        %v299 = vld [vmem:[%s298] sm:$0xff]
        %s300 = scalar_lea.vmem %s232, 16 [#allocation5]
        %v301 = vld [vmem:[%s300] sm:$0xff]
        %s302 = scalar_lea.vmem %s232, 48 [#allocation5]
        %v303 = vld [vmem:[%s302] sm:$0xff]
        %v304 = vmul.f32 %v297, %v301
        %v305 = vmul.f32 %v299, %v303
        %v306 = vadd.f32 %v304, %v305
        %v307 = vadd.f32 %v291, %v306
        %v308 = vmul.f32 %v299, %v301
        %v309 = vmul.f32 %v297, %v303
        %v310 = vsub.f32 %v308, %v309
        %v311 = vadd.f32 %v295, %v310
        %s312 = scalar_lea.vmem %s222, 24 [#allocation2]
        %v313 = vld [vmem:[%s312] sm:$0xff]
        %s314 = scalar_lea.vmem %s222, 56 [#allocation2]
        %v315 = vld [vmem:[%s314] sm:$0xff]
        %s316 = scalar_lea.vmem %s232, 24 [#allocation5]
        %v317 = vld [vmem:[%s316] sm:$0xff]
        %s318 = scalar_lea.vmem %s232, 56 [#allocation5]
        %v319 = vld [vmem:[%s318] sm:$0xff]
        %v320 = vmul.f32 %v313, %v317
        %v321 = vmul.f32 %v315, %v319
        %v322 = vadd.f32 %v320, %v321
        %v323 = vadd.f32 %v307, %v322
        %v324 = vmul.f32 %v315, %v317
        %v325 = vmul.f32 %v313, %v319
        %v326 = vsub.f32 %v324, %v325
        %v327 = vadd.f32 %v311, %v326
        %vm328 = vcmask 130048
        %329 = vst.msk [vmem:[%s258] sm:$0xff] %vm328, %v323
        %s330 = scalar_lea.vmem %s258, 8 [#allocation7]
        %331 = vst.msk [vmem:[%s330] sm:$0xff] %vm328, %v327
        %v332 = vld [vmem:[%s232] sm:$0xff]
        %v333 = vld [vmem:[%s270] sm:$0xff]
        %v334 = vmul.f32 %v323, %v332
        %v335 = vmul.f32 %v327, %v333
        %v336 = vsub.f32 %v334, %v335
        %v337 = vsub.f32 %v323, %v336
        %338 = vst.msk [vmem:[%s265] sm:$0xff] %vm328, %v337
        %v339 = vmul.f32 %v323, %v333
        %v340 = vmul.f32 %v327, %v332
        %v341 = vadd.f32 %v339, %v340
        %v342 = vsub.f32 %v327, %v341
        %s343 = scalar_lea.vmem %s265, 8 [#allocation8]
        %344 = vst.msk [vmem:[%s343] sm:$0xff] %vm328, %v342
        %v345 = vld [vmem:[%s284] sm:$0xff]
        %v346 = vld [vmem:[%s286] sm:$0xff]
        %v347 = vmul.f32 %v323, %v345
        %v348 = vmul.f32 %v327, %v346
        %v349 = vsub.f32 %v347, %v348
        %v350 = vsub.f32 %v323, %v349
        %s351 = scalar_lea.vmem %s265, 16 [#allocation8]
        %352 = vst.msk [vmem:[%s351] sm:$0xff] %vm328, %v350
        %v353 = vmul.f32 %v323, %v346
        %v354 = vmul.f32 %v327, %v345
        %v355 = vadd.f32 %v353, %v354
        %v356 = vsub.f32 %v327, %v355
        %s357 = scalar_lea.vmem %s265, 24 [#allocation8]
        %358 = vst.msk [vmem:[%s357] sm:$0xff] %vm328, %v356
        %v359 = vld [vmem:[%s300] sm:$0xff]
        %v360 = vld [vmem:[%s302] sm:$0xff]
        %v361 = vmul.f32 %v323, %v359
        %v362 = vmul.f32 %v327, %v360
        %v363 = vsub.f32 %v361, %v362
        %v364 = vsub.f32 %v323, %v363
        %s365 = scalar_lea.vmem %s265, 32 [#allocation8]
        %366 = vst.msk [vmem:[%s365] sm:$0xff] %vm328, %v364
        %v367 = vmul.f32 %v323, %v360
        %v368 = vmul.f32 %v327, %v359
        %v369 = vadd.f32 %v367, %v368
        %v370 = vsub.f32 %v327, %v369
        %s371 = scalar_lea.vmem %s265, 40 [#allocation8]
        %372 = vst.msk [vmem:[%s371] sm:$0xff] %vm328, %v370
        %v373 = vld [vmem:[%s316] sm:$0xff]
        %v374 = vld [vmem:[%s318] sm:$0xff]
        %v375 = vmul.f32 %v323, %v373
        %v376 = vmul.f32 %v327, %v374
        %v377 = vsub.f32 %v375, %v376
        %v378 = vsub.f32 %v323, %v377
        %s379 = scalar_lea.vmem %s265, 48 [#allocation8]
        %380 = vst.msk [vmem:[%s379] sm:$0xff] %vm328, %v378
        %v381 = vmul.f32 %v323, %v374
        %v382 = vmul.f32 %v327, %v373
        %v383 = vadd.f32 %v381, %v382
        %v384 = vsub.f32 %v327, %v383
        %s385 = scalar_lea.vmem %s265, 56 [#allocation8]
        %386 = vst.msk [vmem:[%s385] sm:$0xff] %vm328, %v384
        %s387 = sand.u32 %s105, 1
        %s388 = scalar_lea.sflag [#allocation4], %s387
        %s389 = sand.u32 %s105, 1
        %s390 = smul.addr %s389, 16
        %s391 = scalar_lea.vmem [#allocation7], %s390
        %s392 = sand.u32 %s133, 1
        %s393 = scalar_lea.sflag [#allocation9], %s392
        %s394 = sand.u32 %s133, 1
        %s395 = smul.addr %s394, 64
        %s396 = scalar_lea.vmem [#allocation8], %s395
        // Predicated region
        $region37: #{tpu_custom_call.1} parent=27 // pred_check
          %p397 = pneg %p115
        $region38: #{tpu_custom_call.1} parent=27 // pred_check_branch
          %399 = sbr.rel (%p397) target = $region40
        $region39: #{tpu_custom_call.1} parent=27 // pred_region
          %401 = vsyncadd %s388, 0
          %s402 = smul.addr %s31, 4
          %s403 = sadd.s32 %s32, %s402
          %s404 = smul.addr %s403, 8
          %s405 = scalar_lea.hbm %s2, %s404
          %s406 = sshll.u32 %s391, 4
          %s407 = int_to_ptr.vmem [resolvable:$true] %s406
          %s408 = sshll.u32 %s405, 4
          %s409 = int_to_ptr.hbm [resolvable:$true] %s408
          %414 = dma.vmem_to_hbm [thread:$0]  %s407, 256, %s409, %s388, 128, 256, 8
        $region40: #{tpu_custom_call.1} parent=27 // pred_fallthru
          _
        // Predicated region
        $region41: #{tpu_custom_call.1} parent=27 // pred_check
          %p415 = pneg %p143
        $region42: #{tpu_custom_call.1} parent=27 // pred_check_branch
          %417 = sbr.rel (%p415) target = $region44
        $region43: #{tpu_custom_call.1} parent=27 // pred_region
          %419 = vsyncadd %s393, 0
          %s420 = smul.addr %s31, 16
          %s421 = sadd.s32 %s32, %s420
          %s422 = smul.addr %s421, 8
          %s423 = scalar_lea.hbm %s3, %s422
          %s424 = sshll.u32 %s396, 4
          %s425 = int_to_ptr.vmem [resolvable:$true] %s424
          %s426 = sshll.u32 %s423, 4
          %s427 = int_to_ptr.hbm [resolvable:$true] %s426
          %432 = dma.vmem_to_hbm [thread:$0]  %s425, 1024, %s427, %s393, 128, 256, 8
        $region44: #{tpu_custom_call.1} parent=27 // pred_fallthru
          _
      $region28: #{tpu_custom_call.1} parent=5 // pred_fallthru
        _
      %p433 = scmp.le.s32.totalorder 2, %s22
      // Predicated region
      $region45: #{tpu_custom_call.1} parent=5 // pred_check
        %p434 = pneg %p433
      $region46: #{tpu_custom_call.1} parent=5 // pred_check_branch
        %436 = sbr.rel (%p434) target = $region48
      $region47: #{tpu_custom_call.1} parent=5 // pred_region
        %s437 = ssub.s32 %s22, 2
        // Predicated region
        $region49: #{tpu_custom_call.1} parent=47 // pred_check
          %p438 = pneg %p121
        $region50: #{tpu_custom_call.1} parent=47 // pred_check_branch
          %440 = sbr.rel (%p438) target = $region52
        $region51: #{tpu_custom_call.1} parent=47 // pred_region
          %s441 = sand.u32 %s106, 1
          %s442 = scalar_lea.sflag [#allocation4], %s441
          %s443 = sand.u32 %s106, 1
          %s444 = smul.addr %s443, 16
          %s445 = scalar_lea.vmem [#allocation7], %s444
          %447 = dma.done %s442, 256
        $region52: #{tpu_custom_call.1} parent=47 // pred_fallthru
          _
        // Predicated region
        $region53: #{tpu_custom_call.1} parent=47 // pred_check
          %p448 = pneg %p149
        $region54: #{tpu_custom_call.1} parent=47 // pred_check_branch
          %450 = sbr.rel (%p448) target = $region56
        $region55: #{tpu_custom_call.1} parent=47 // pred_region
          %s451 = sand.u32 %s134, 1
          %s452 = scalar_lea.sflag [#allocation9], %s451
          %s453 = sand.u32 %s134, 1
          %s454 = smul.addr %s453, 64
          %s455 = scalar_lea.vmem [#allocation8], %s454
          %457 = dma.done %s452, 1024
        $region56: #{tpu_custom_call.1} parent=47 // pred_fallthru
          _
      $region48: #{tpu_custom_call.1} parent=5 // pred_fallthru
        _
    $region6: #{tpu_custom_call.1} parent=1 // loop_footer
      %s26 = sadd.s32 1, %s22
    $region7: #{tpu_custom_call.1} parent=1 // loop_footer_branch
      %21 = sbr.rel target = $region3
    $region8: #{tpu_custom_call.1} parent=1 // loop_exit
      _
    %458 = vsyncpa [#allocation3], 1
    %s459 = scalar_lea.sflag [#allocation3], 1
    %460 = vsyncpa %s459, 1
    %461 = vsyncpa [#allocation6], 1
    %s462 = scalar_lea.sflag [#allocation6], 1
    %463 = vsyncpa %s462, 1
    %464 = vsyncpa [#allocation4], 1
    %s465 = scalar_lea.sflag [#allocation4], 1
    %466 = vsyncpa %s465, 1
    %467 = vsyncpa [#allocation9], 1
    %s468 = scalar_lea.sflag [#allocation9], 1
    %469 = vsyncpa %s468, 1

</llo_original>
